<compile_context>
chip_gen: v5e
topology: v5e:2x2
jax: 0.10.0
libtpu: 0.0.40
codegen_flags: <defaults>
</compile_context>

<pallas_src>
import functools
import math

import jax
import jax.numpy as jnp
from jax import lax
from jax.experimental import pallas as pl
from jax.experimental.pallas import tpu as pltpu


# Feature maps / projected support travel in bf16; all matmuls accumulate in f32.
FEATURE_DTYPE = jnp.bfloat16


def _choose_tile(n, target=128):
    """Largest divisor of n that is <= target and a multiple of 8; else n (full)."""
    if n <= target:
        return n
    for t in range(target, 7, -1):
        if n % t == 0 and t % 8 == 0:
            return t
    # Fallback: a single whole-axis block.  Guard against silently creating a huge
    # block for awkward (odd / prime) N — pad the vertex count upstream instead.
    assert n <= 4096, f"no 8-aligned tile divides N={n}; pad the vertex count"
    return n


def _linear_tile(n, c_in, s, c_out):
    """Row tile for the per-vertex linear: target 256 when the contraction is deep
    enough for the 256-wide MXU (v6e/v7x), else 128; shrink if the double-buffered
    working set (weights + streams) would exceed ~24 MiB."""
    target = 256 if c_in >= 128 else 128
    weight_bytes = 2 * 2 * c_in * (s + 1) * c_out          # bf16, double-buffered
    while target > 16:
        stream_bytes = 2 * 2 * target * (c_in + (s + 1) * c_out)
        if weight_bytes + stream_bytes <= 24 * 1024 * 1024:
            break
        target //= 2
    return _choose_tile(n, target)


# --------------------------------------------------------------------------
# Pallas kernel 1: pairwise squared-distance matrix (row-tiled per batch element)
#   dist = -2 * V V^T + |v_i|^2 + |v_j|^2   (same formula as gcn3d.get_neighbor_index)
# --------------------------------------------------------------------------
def _pairwise_dist_kernel(vr_ref, v_ref, sqc_ref, d_ref):
    vr = vr_ref[0]                                                 # (TILE, 3)
    v = v_ref[0]                                                   # (N, 3)
    inner = lax.dot_general(vr, v, (((1,), (1,)), ((), ())),
                            preferred_element_type=jnp.float32)    # (TILE, N)
    sqr = jnp.sum(vr * vr, axis=1, keepdims=True)                  # (TILE, 1)
    d_ref[0] = -2.0 * inner + sqr + sqc_ref[0]                     # + row & col |v|^2


def pairwise_distance(vertices):
    B, N, _ = vertices.shape
    tile = _choose_tile(N, 256)
    sqc = jnp.sum(vertices * vertices, axis=-1)[:, None, :]        # (B, 1, N)
    return pl.pallas_call(
        _pairwise_dist_kernel,
        out_shape=jax.ShapeDtypeStruct((B, N, N), jnp.float32),
        grid=(B, N // tile),
        in_specs=[
            pl.BlockSpec((1, tile, 3), lambda b, t: (b, t, 0)),
            pl.BlockSpec((1, N, 3), lambda b, t: (b, 0, 0)),
            pl.BlockSpec((1, 1, N), lambda b, t: (b, 0, 0)),
        ],
        out_specs=pl.BlockSpec((1, tile, N), lambda b, t: (b, t, 0)),
        compiler_params=pltpu.CompilerParams(
            dimension_semantics=("parallel", "parallel")),
    )(vertices, vertices, sqc)


def get_neighbor_index(vertices, neighbor_num):
    # TODO(synk): a fused per-row running top-(k+1) inside the dist kernel would avoid
    # writing the (B, N, N) dist matrix to HBM; kept as XLA top_k for now.
    dist = pairwise_distance(vertices)
    _, idx = jax.lax.top_k(-dist, neighbor_num + 1)   # k+1 smallest distances
    return idx[:, :, 1:].astype(jnp.int32)            # drop self


def indexing_neighbor(tensor, index):
    # tensor: (B, N, D), index: (B, N, K) -> (B, N, K, D)
    return jax.vmap(lambda t, i: t[i])(tensor, index)


def neighbor_directions_norm(vertices, neighbor_index):
    """Normalized neighbor directions, k-major (B, K, N, 3).  Computed once per
    neighbor_index and reused by every conv layer sharing it."""
    nb = indexing_neighbor(vertices, neighbor_index)               # (B, N, K, 3)
    nd = nb - vertices[:, :, None, :]
    norm = jnp.sqrt(jnp.sum(nd * nd, axis=-1, keepdims=True))
    ndn = nd / jnp.maximum(norm, 1e-12)                            # F.normalize(dim=-1)
    return jnp.transpose(ndn, (0, 2, 1, 3)).astype(jnp.float32)    # (B, K, N, 3)


# --------------------------------------------------------------------------
# Pallas kernel 2: per-vertex linear (center + support) — BEFORE any gather
# --------------------------------------------------------------------------
def _linear_kernel(fm_ref, wc_ref, ws_ref, bc_ref, bs_ref, fc_ref, fs_ref):
    fm = fm_ref[0]                                                 # (TILE_N, C_in) bf16
    center = jnp.dot(fm, wc_ref[...], preferred_element_type=jnp.float32) + bc_ref[...]
    support = jnp.dot(fm, ws_ref[...], preferred_element_type=jnp.float32) + bs_ref[...]
    fc_ref[0] = center.astype(fc_ref.dtype)
    fs_ref[0] = support.astype(fs_ref.dtype)


# --------------------------------------------------------------------------
# Pallas kernel 3: fused gather + theta + neighbor-max + support-sum + center add.
#   Streams over the K neighbors (running max), gathers the projected support from
#   the VMEM-resident full-N f_support block with a one-hot MXU matmul per neighbor,
#   and computes theta with 3 broadcast FMAs on the VPU (no padded dim-3 MXU pass).
#   Optionally fuses the global max over vertices (running-max output accumulator
#   across N-tiles — that grid axis must be "arbitrary").
# --------------------------------------------------------------------------
def _aggregate_kernel(nidx_ref, ndn_ref, fc_ref, fs_ref, dirs_ref, out_ref,
                      *, S, fuse_global_max):
    _, tile_n, K = nidx_ref.shape
    N = fs_ref.shape[1]
    SC = fs_ref.shape[2]                                           # S * C_out
    C_out = SC // S

    nidx = nidx_ref[0]                                             # (tile_n, K) int32
    ndn = ndn_ref[0]                                               # (K, tile_n, 3) f32
    dirs = dirs_ref[...]                                           # (3, S*C_out) f32
    fs = fs_ref[0]                                                 # (N, S*C_out) bf16

    col_iota = lax.broadcasted_iota(jnp.int32, (tile_n, N), 1)

    acc = None
    for k in range(K):                       # streamed: peak temps ~ (tile_n, S*C_out)
        nk = ndn[k]                                                # (tile_n, 3)
        # theta_k = relu(ndn_k @ dirs) as 3 broadcast FMAs (VPU) — avoids a padded
        # contraction-dim-3 MXU pass (worst on v5e's 4x128 MXU).
        theta = (nk[:, 0:1] * dirs[0:1, :]
                 + nk[:, 1:2] * dirs[1:2, :]
                 + nk[:, 2:3] * dirs[2:3, :])
        theta = jnp.maximum(theta, 0.0)                            # (tile_n, S*C_out)

        # In-VMEM gather of the k-th neighbor's projected support: one-hot MXU matmul
        # against the resident f_support block — exact (0/1 weights, f32 accumulate).
        one_hot = (nidx[:, k:k + 1] == col_iota).astype(fs.dtype)  # (tile_n, N)
        gathered = jnp.dot(one_hot, fs, preferred_element_type=jnp.float32)

        act = theta * gathered
        acc = act if acc is None else jnp.maximum(acc, act)        # running neighbor-max

    if S > 1:
        support = jnp.sum(acc.reshape(tile_n, S, C_out), axis=1)   # sum over supports
    else:
        support = acc
    fused = fc_ref[0].astype(jnp.float32) + support                # (tile_n, C_out)

    if fuse_global_max:
        tmax = jnp.max(fused, axis=0, keepdims=True)               # (1, C_out)

        @pl.when(pl.program_id(1) == 0)
        def _():
            out_ref[0] = tmax

        @pl.when(pl.program_id(1) > 0)
        def _():
            out_ref[0] = jnp.maximum(out_ref[0], tmax)
    else:
        out_ref[0] = fused.astype(out_ref.dtype)


def gcn_conv_layer(params, ndn, neighbor_index, feature_map,
                   *, support_num, out_channel, fuse_global_max=False):
    B, N, K = neighbor_index.shape
    C_in = feature_map.shape[-1]
    S, C_out = support_num, out_channel

    # --- parameters split in the wrapper so in-kernel slices stay lane-aligned ---
    weights = params["weights"]                                    # (C_in, (S+1)*C_out)
    w_center = weights[:, :C_out].astype(FEATURE_DTYPE)
    w_support = weights[:, C_out:].astype(FEATURE_DTYPE)
    bias = params["bias"]
    b_center = bias[:C_out].reshape(1, C_out).astype(jnp.float32)
    b_support = bias[C_out:].reshape(1, S * C_out).astype(jnp.float32)
    directions = params["directions"]                              # (3, S*C_out)
    dnorm = jnp.sqrt(jnp.sum(directions * directions, axis=0, keepdims=True))
    dirs_norm = (directions / jnp.maximum(dnorm, 1e-12)).astype(jnp.float32)

    fm = feature_map.astype(FEATURE_DTYPE)

    # --- stage 1: per-vertex linear (center + support), before any gather -------
    tile_lin = _linear_tile(N, C_in, S, C_out)
    f_center, f_support = pl.pallas_call(
        _linear_kernel,
        out_shape=(jax.ShapeDtypeStruct((B, N, C_out), FEATURE_DTYPE),
                   jax.ShapeDtypeStruct((B, N, S * C_out), FEATURE_DTYPE)),
        grid=(B, N // tile_lin),
        in_specs=[
            pl.BlockSpec((1, tile_lin, C_in), lambda b, t: (b, t, 0)),
            pl.BlockSpec((C_in, C_out), lambda b, t: (0, 0)),
            pl.BlockSpec((C_in, S * C_out), lambda b, t: (0, 0)),
            pl.BlockSpec((1, C_out), lambda b, t: (0, 0)),
            pl.BlockSpec((1, S * C_out), lambda b, t: (0, 0)),
        ],
        out_specs=(pl.BlockSpec((1, tile_lin, C_out), lambda b, t: (b, t, 0)),
                   pl.BlockSpec((1, tile_lin, S * C_out), lambda b, t: (b, t, 0))),
        compiler_params=pltpu.CompilerParams(
            dimension_semantics=("parallel", "parallel")),
    )(fm, w_center, w_support, b_center, b_support)

    # --- stage 2: fused gather + aggregate (no HBM round trip of gathered support) ---
    tile_n = _choose_tile(N, 128)
    n_tiles = N // tile_n
    kern = functools.partial(_aggregate_kernel, S=S, fuse_global_max=fuse_global_max)
    if fuse_global_max:
        out_shape = jax.ShapeDtypeStruct((B, 1, C_out), jnp.float32)
        out_spec = pl.BlockSpec((1, 1, C_out), lambda b, t: (b, 0, 0))
        # N-tile axis must be "arbitrary": the output block is a running-max
        # accumulator resident across tiles.
        dims = ("parallel", "arbitrary")
    else:
        out_shape = jax.ShapeDtypeStruct((B, N, C_out), FEATURE_DTYPE)
        out_spec = pl.BlockSpec((1, tile_n, C_out), lambda b, t: (b, t, 0))
        dims = ("parallel", "parallel")

    return pl.pallas_call(
        kern,
        out_shape=out_shape,
        grid=(B, n_tiles),
        in_specs=[
            pl.BlockSpec((1, tile_n, K), lambda b, t: (b, t, 0)),        # neighbor idx
            pl.BlockSpec((1, K, tile_n, 3), lambda b, t: (b, 0, t, 0)),  # ndn (k-major)
            pl.BlockSpec((1, tile_n, C_out), lambda b, t: (b, t, 0)),    # f_center
            pl.BlockSpec((1, N, S * C_out), lambda b, t: (b, 0, 0)),     # f_support, full N
            pl.BlockSpec((3, S * C_out), lambda b, t: (0, 0)),           # normalized dirs
        ],
        out_specs=out_spec,
        compiler_params=pltpu.CompilerParams(dimension_semantics=dims),
    )(neighbor_index, ndn, f_center, f_support, dirs_norm)


# --------------------------------------------------------------------------
# Pallas kernel 4: classifier head on the (already max-pooled) global feature
#   Linear(1024,256) -> Dropout(eval=identity) -> BatchNorm1d(eval) -> ReLU -> Linear(256,40)
# --------------------------------------------------------------------------
def _classifier_kernel(g_ref, w1_ref, b1_ref, sc_ref, sh_ref, w2_ref, b2_ref, out_ref):
    h = jnp.dot(g_ref[...], w1_ref[...], preferred_element_type=jnp.float32) + b1_ref[...]
    h = h * sc_ref[...] + sh_ref[...]                              # BatchNorm1d (eval stats)
    h = jnp.maximum(h, 0.0)                                        # ReLU
    out_ref[...] = (jnp.dot(h, w2_ref[...], preferred_element_type=jnp.float32)
                    + b2_ref[...]).astype(out_ref.dtype)


def classifier(params, feature_global):
    B = feature_global.shape[0]
    w1, b1 = params["w1"], params["b1"].reshape(1, -1)
    w2, b2 = params["w2"], params["b2"].reshape(1, -1)
    eps = 1e-5
    scale = (params["bn_gamma"] / jnp.sqrt(params["bn_var"] + eps)).reshape(1, -1)
    shift = (params["bn_beta"] - params["bn_mean"] * scale[0]).reshape(1, -1)
    vmem = pl.BlockSpec(memory_space=pltpu.MemorySpace.VMEM)
    return pl.pallas_call(
        _classifier_kernel,
        out_shape=jax.ShapeDtypeStruct((B, w2.shape[1]), jnp.float32),
        in_specs=[vmem] * 7,
        out_specs=vmem,
    )(feature_global.astype(jnp.float32), w1, b1, scale, shift, w2, b2)


# --------------------------------------------------------------------------
# GCN3D forward — mirrors the PyTorch forward (it skips conv_2_2..conv_3_4 and
# pool_2, exactly as the reference forward does).
# --------------------------------------------------------------------------
_LAYER_SPECS = {
    "conv_0": (3, 32), "conv_1": (32, 64), "conv_1_2": (64, 64),
    "conv_1_3": (64, 64), "conv_1_4": (64, 64), "pool_1": (64, 64),
    "conv_2": (64, 128), "conv_3": (128, 256), "conv_4": (256, 1024),
    "conv_4_2": (1024, 1024), "conv_4_3": (1024, 1024), "conv_4_4": (1024, 1024),
}


def gcn3d_forward(params, vertices, *, support_num, neighbor_num, stride=2):
    def conv(name, ndn, n_idx, fm, **kw):
        return gcn_conv_layer(params[name], ndn, n_idx, fm,
                              support_num=support_num,
                              out_channel=_LAYER_SPECS[name][1], **kw)

    neighbor_index = get_neighbor_index(vertices, neighbor_num)
    ndn = neighbor_directions_norm(vertices, neighbor_index)   # hoisted, reused by 6 layers
    fm_0 = conv("conv_0", ndn, neighbor_index, vertices)
    fm_1 = conv("conv_1", ndn, neighbor_index, fm_0)
    fm_1 = conv("conv_1_2", ndn, neighbor_index, fm_1)
    fm_1 = conv("conv_1_3", ndn, neighbor_index, fm_1)
    fm_1 = conv("conv_1_4", ndn, neighbor_index, fm_1)
    fm_1 = conv("pool_1", ndn, neighbor_index, fm_1)
    # TODO(synk): the reference Pool_layer subsamples vertices randomly; a deterministic
    # every-stride-th subsample is used here instead.
    keep = jnp.arange(0, vertices.shape[1], stride)
    vertices = vertices[:, keep, :]
    fm_1 = fm_1[:, keep, :]

    neighbor_index = get_neighbor_index(vertices, neighbor_num)
    ndn = neighbor_directions_norm(vertices, neighbor_index)
    fm_2 = conv("conv_2", ndn, neighbor_index, fm_1)
    fm_3 = conv("conv_3", ndn, neighbor_index, fm_2)
    fm_4 = conv("conv_4", ndn, neighbor_index, fm_3)
    fm_4 = conv("conv_4_2", ndn, neighbor_index, fm_4)
    fm_4 = conv("conv_4_3", ndn, neighbor_index, fm_4)
    # Last conv fuses feature_global = fm_4.max(1)[0] into its epilogue.
    feature_global = conv("conv_4_4", ndn, neighbor_index, fm_4,
                          fuse_global_max=True)[:, 0, :]            # (B, 1024)
    return classifier(params["classifier"], feature_global)


# --------------------------------------------------------------------------
# Deterministic parameter init (matches the Conv_layer.initialize() scheme)
# --------------------------------------------------------------------------
def init_conv_params(key, in_channel, out_channel, support_num):
    stdv = 1.0 / math.sqrt(out_channel * (support_num + 1))
    k1, k2, k3 = jax.random.split(key, 3)
    return {
        "weights": jax.random.uniform(k1, (in_channel, (support_num + 1) * out_channel),
                                      jnp.float32, -stdv, stdv),
        "bias": jax.random.uniform(k2, ((support_num + 1) * out_channel,),
                                   jnp.float32, -stdv, stdv),
        "directions": jax.random.uniform(k3, (3, support_num * out_channel),
                                         jnp.float32, -stdv, stdv),
    }


def init_classifier_params(key):
    k1, k2, k3, k4 = jax.random.split(key, 4)
    s1 = 1.0 / math.sqrt(1024)
    s2 = 1.0 / math.sqrt(256)
    return {
        "w1": jax.random.uniform(k1, (1024, 256), jnp.float32, -s1, s1),
        "b1": jax.random.uniform(k2, (256,), jnp.float32, -s1, s1),
        "bn_gamma": jnp.ones((256,), jnp.float32),
        "bn_beta": jnp.zeros((256,), jnp.float32),
        "bn_mean": jnp.zeros((256,), jnp.float32),
        "bn_var": jnp.ones((256,), jnp.float32),
        "w2": jax.random.uniform(k3, (256, 40), jnp.float32, -s2, s2),
        "b2": jax.random.uniform(k4, (40,), jnp.float32, -s2, s2),
    }


if __name__ == "__main__":
    # Small but forward-consistent shapes
    B, N = 2, 64
    support_num, neighbor_num = 1, 8

    key = jax.random.PRNGKey(0)
    k_vert, k_params = jax.random.split(key)
    vertices = jax.random.normal(k_vert, (B, N, 3), jnp.float32)

    layer_names = list(_LAYER_SPECS.keys())
    keys = jax.random.split(k_params, len(layer_names) + 1)
    params = {
        name: init_conv_params(k, _LAYER_SPECS[name][0], _LAYER_SPECS[name][1], support_num)
        for name, k in zip(layer_names, keys[:-1])
    }
    # Layers created in __init__ but never used in forward (conv_2_2..conv_3_4, pool_2)
    # are omitted — they do not affect the forward pass.
    params["classifier"] = init_classifier_params(keys[-1])

    pred = gcn3d_forward(params, vertices,
                         support_num=support_num, neighbor_num=neighbor_num, stride=2)
    pred = jax.block_until_ready(pred)
    assert pred.shape == (B, 40) and pred.dtype == jnp.float32
    print("KERNEL_OK")
</pallas_src>

<mosaic_0001>
module attributes {stable_mosaic.version = 11 : i64} {
  func.func @_pairwise_dist_kernel(%arg0: i32, %arg1: i32, %arg2: memref<1x64x3xf32, #tpu.memory_space<vmem>>, %arg3: memref<1x64x3xf32, #tpu.memory_space<vmem>>, %arg4: memref<1x1x64xf32, #tpu.memory_space<vmem>>, %arg5: memref<1x64x64xf32, #tpu.memory_space<vmem>>) attributes {dimension_semantics = [#tpu.dimension_semantics<parallel>, #tpu.dimension_semantics<parallel>], iteration_bounds = array<i64: 2, 1>, scalar_prefetch = 0 : i64, scratch_operands = 0 : i64, tpu.core_type = #tpu.core_type<tc>, window_params = [{transform_indices = @transform_0, window_bounds = array<i64: 1, 64, 3>}, {transform_indices = @transform_1, window_bounds = array<i64: 1, 64, 3>}, {transform_indices = @transform_2, window_bounds = array<i64: 1, 1, 64>}, {transform_indices = @transform_3, window_bounds = array<i64: 1, 64, 64>}]} {
    %c0 = arith.constant 0 : index
    %c0_0 = arith.constant 0 : index
    %c0_1 = arith.constant 0 : index
    %0 = vector.load %arg2[%c0, %c0_0, %c0_1] : memref<1x64x3xf32, #tpu.memory_space<vmem>>, vector<1x64x3xf32>
    %1 = vector.shape_cast %0 : vector<1x64x3xf32> to vector<64x3xf32>
    %c0_2 = arith.constant 0 : index
    %c0_3 = arith.constant 0 : index
    %c0_4 = arith.constant 0 : index
    %2 = vector.load %arg3[%c0_2, %c0_3, %c0_4] : memref<1x64x3xf32, #tpu.memory_space<vmem>>, vector<1x64x3xf32>
    %3 = vector.shape_cast %2 : vector<1x64x3xf32> to vector<64x3xf32>
    %cst = arith.constant dense<0.000000e+00> : vector<64x64xf32>
    %4 = tpu.matmul %1, %3, %cst {dimension_numbers = #tpu.dot_dimension_numbers<[1], [1], [0], [0], [0, 0, 1, 0], [], []>} : vector<64x3xf32>, vector<64x3xf32>, vector<64x64xf32> -> vector<64x64xf32>
    %5 = arith.mulf %1, %1 : vector<64x3xf32>
    %cst_5 = arith.constant dense<0.000000e+00> : vector<64xf32>
    %6 = vector.multi_reduction <add>, %5, %cst_5 [1] : vector<64x3xf32> to vector<64xf32>
    %7 = vector.shape_cast %6 : vector<64xf32> to vector<64x1xf32>
    %cst_6 = arith.constant -2.000000e+00 : f32
    %8 = vector.broadcast %cst_6 : f32 to vector<64x64xf32>
    %9 = arith.mulf %8, %4 : vector<64x64xf32>
    %10 = vector.broadcast %7 : vector<64x1xf32> to vector<64x64xf32>
    %11 = arith.addf %9, %10 : vector<64x64xf32>
    %c0_7 = arith.constant 0 : index
    %c0_8 = arith.constant 0 : index
    %c0_9 = arith.constant 0 : index
    %12 = vector.load %arg4[%c0_7, %c0_8, %c0_9] : memref<1x1x64xf32, #tpu.memory_space<vmem>>, vector<1x1x64xf32>
    %13 = vector.shape_cast %12 : vector<1x1x64xf32> to vector<1x64xf32>
    %14 = vector.broadcast %13 : vector<1x64xf32> to vector<64x64xf32>
    %15 = arith.addf %11, %14 : vector<64x64xf32>
    %c0_10 = arith.constant 0 : index
    %c0_11 = arith.constant 0 : index
    %c0_12 = arith.constant 0 : index
    %16 = vector.load %arg5[%c0_10, %c0_11, %c0_12] : memref<1x64x64xf32, #tpu.memory_space<vmem>>, vector<1x64x64xf32>
    %17 = vector.shape_cast %16 : vector<1x64x64xf32> to vector<64x64xf32>
    %18 = vector.shape_cast %15 : vector<64x64xf32> to vector<1x64x64xf32>
    tpu.vector_store %arg5[%c0_10, %c0_11, %c0_12], %18 {strides = array<i32>} : memref<1x64x64xf32, #tpu.memory_space<vmem>>, vector<1x64x64xf32>,
    return
  }
  func.func @transform_0(%arg0: i32, %arg1: i32) -> (i32, i32, i32) {
    %c0_i32 = arith.constant 0 : i32
    %c0_i32_0 = arith.constant 0 : i32
    return %arg0, %arg1, %c0_i32 : i32, i32, i32
  }
  func.func @transform_1(%arg0: i32, %arg1: i32) -> (i32, i32, i32) {
    %c0_i32 = arith.constant 0 : i32
    %c0_i32_0 = arith.constant 0 : i32
    %c0_i32_1 = arith.constant 0 : i32
    return %arg0, %c0_i32, %c0_i32_0 : i32, i32, i32
  }
  func.func @transform_2(%arg0: i32, %arg1: i32) -> (i32, i32, i32) {
    %c0_i32 = arith.constant 0 : i32
    %c0_i32_0 = arith.constant 0 : i32
    %c0_i32_1 = arith.constant 0 : i32
    return %arg0, %c0_i32, %c0_i32_0 : i32, i32, i32
  }
  func.func @transform_3(%arg0: i32, %arg1: i32) -> (i32, i32, i32) {
    %c0_i32 = arith.constant 0 : i32
    %c0_i32_0 = arith.constant 0 : i32
    return %arg0, %arg1, %c0_i32 : i32, i32, i32
  }
}

</mosaic_0001>

<llo_original>
// kernel: tpu_custom_call.1
$region0: #{tpu_custom_call.1}
  #allocation0 [shape = 'u32[]', space=smem, size = 0x4, offset = 0x4, fixed_abs, tag = 'smem constant byte address 0x4 - core index']
  #allocation1 [shape = 'u32[72,128]{1,0:T(1,128)}', space=vmem, size = 0x9000, scoped, tag = 'internal scratch']
  %s0 = inlined_call_operand.vmem [shape: f32[2,64,3], index: 0, kind: input, shape index: {}]
  %s1 = inlined_call_operand.vmem [shape: f32[2,64,3], index: 1, kind: input, shape index: {}]
  %s2 = inlined_call_operand.vmem [shape: f32[2,1,64], index: 2, kind: input, shape index: {}]
  %s3 = inlined_call_operand.hbm [shape: f32[2,64,64], index: 3, kind: output, shape index: {}]
  %s4 = sld [smem:[#allocation0]]
  $region45: #{tpu_custom_call.1} parent=0
    _
  %s6 = ssub.s32 1, %s4
  %s7 = scalar_select 0, %s6, %s4
  $region1: #{tpu_custom_call.1} parent=0
    #allocation2 [shape = 'u8[65536]{0}', space=vmem, size = 0x10000, scoped, tag = 'output window, operand 0']
    #allocation3 [shape = 's32[2]{0}', space=sflag, size = 0x8, scoped, tag = 'scoped memory for tpu_custom_call.1']
    %8 = vsyncpa [#allocation3], 0
    %s9 = scalar_lea.sflag [#allocation3], 1
    %10 = vsyncpa %s9, 0
    loop: start=0, step=1, limit=4
    $region2: #{tpu_custom_call.1} parent=1 // loop_pre_header
      _
    $region3: #{tpu_custom_call.1} parent=1 // loop_header
      %s12 = sphi 0, %s16
      %p13 = scmp.ge.s32.totalorder %s12, 4
      %s19 = sphi 0, %s31
      %s20 = sphi 0, %s27
      %s21 = sphi 0, %s19
      %s22 = sphi 0, %s20
      %s23 = sphi 0, %s21
      %s24 = sphi 0, %s22
      %s36 = sphi 0, %s38
      %s39 = sphi 0, %s36
      %s40 = sphi 0, %s39
      %s56 = sphi 0, %s40
      %s62 = sphi 0, %s64
      %s65 = sphi 0, %s62
      %s66 = sphi 0, %s65
      %s82 = sphi 0, %s66
      %s88 = sphi 0, %s90
      %s91 = sphi 0, %s88
      %s92 = sphi 0, %s91
      %s108 = sphi 0, %s92
      %s116 = sphi 0, %s118
      %s119 = sphi 0, %s116
      %s120 = sphi 0, %s119
      %s136 = sphi 0, %s120
    $region4: #{tpu_custom_call.1} parent=1 // loop_header_branch
      %15 = sbr.rel (%p13) target = $region8
    $region5: #{tpu_custom_call.1} parent=1 // loop_body
      %s17 = ssub.s32 %s12, 1
      %s18 = ssub.s32 %s12, 2
      %s25 = sadd.s32 1, %s20
      %p26 = scmp.ge.s32.totalorder %s25, 1
      %s27 = scalar_select %p26, 0, %s25
      %s28 = sadd.s32 1, %s19
      %s29 = scalar_select %p26, %s28, %s19
      %p30 = scmp.ge.s32.totalorder %s29, 2
      %s31 = scalar_select %p30, 0, %s29
      %s32 = ssub.s32 %s19, %s31
      %s33 = ssub.s32 %s20, %s27
      %s34 = sor.u32 %s32, %s33
      %p35 = scmp.eq.s32.totalorder %s34, 0
      %s37 = sadd.s32 %s36, 1
      %s38 = scalar_select %p35, %s36, %s37
      %p41 = pneg %p35
      %p42 = scmp.eq.s32.totalorder %s12, 1
      %p43 = por %p41, %p42
      %p44 = scmp.ne.s32.totalorder %s36, %s39
      %p45 = scmp.eq.s32.totalorder %s12, 0
      %p46 = por %p44, %p45
      %p47 = scmp.ne.s32.totalorder %s36, %s39
      %p48 = scmp.eq.s32.totalorder %s17, 1
      %p49 = por %p47, %p48
      %p50 = scmp.ne.s32.totalorder %s39, %s40
      %p51 = scmp.eq.s32.totalorder %s17, 0
      %p52 = por %p50, %p51
      %p53 = scmp.ne.s32.totalorder %s39, %s40
      %p54 = scmp.eq.s32.totalorder %s18, 1
      %p55 = por %p53, %p54
      %p57 = scmp.ne.s32.totalorder %s40, %s56
      %p58 = scmp.eq.s32.totalorder %s18, 0
      %p59 = por %p57, %p58
      %s60 = ssub.s32 %s19, %s31
      %p61 = scmp.eq.s32.totalorder %s60, 0
      %s63 = sadd.s32 %s62, 1
      %s64 = scalar_select %p61, %s62, %s63
      %p67 = pneg %p61
      %p68 = scmp.eq.s32.totalorder %s12, 1
      %p69 = por %p67, %p68
      %p70 = scmp.ne.s32.totalorder %s62, %s65
      %p71 = scmp.eq.s32.totalorder %s12, 0
      %p72 = por %p70, %p71
      %p73 = scmp.ne.s32.totalorder %s62, %s65
      %p74 = scmp.eq.s32.totalorder %s17, 1
      %p75 = por %p73, %p74
      %p76 = scmp.ne.s32.totalorder %s65, %s66
      %p77 = scmp.eq.s32.totalorder %s17, 0
      %p78 = por %p76, %p77
      %p79 = scmp.ne.s32.totalorder %s65, %s66
      %p80 = scmp.eq.s32.totalorder %s18, 1
      %p81 = por %p79, %p80
      %p83 = scmp.ne.s32.totalorder %s66, %s82
      %p84 = scmp.eq.s32.totalorder %s18, 0
      %p85 = por %p83, %p84
      %s86 = ssub.s32 %s19, %s31
      %p87 = scmp.eq.s32.totalorder %s86, 0
      %s89 = sadd.s32 %s88, 1
      %s90 = scalar_select %p87, %s88, %s89
      %p93 = pneg %p87
      %p94 = scmp.eq.s32.totalorder %s12, 1
      %p95 = por %p93, %p94
      %p96 = scmp.ne.s32.totalorder %s88, %s91
      %p97 = scmp.eq.s32.totalorder %s12, 0
      %p98 = por %p96, %p97
      %p99 = scmp.ne.s32.totalorder %s88, %s91
      %p100 = scmp.eq.s32.totalorder %s17, 1
      %p101 = por %p99, %p100
      %p102 = scmp.ne.s32.totalorder %s91, %s92
      %p103 = scmp.eq.s32.totalorder %s17, 0
      %p104 = por %p102, %p103
      %p105 = scmp.ne.s32.totalorder %s91, %s92
      %p106 = scmp.eq.s32.totalorder %s18, 1
      %p107 = por %p105, %p106
      %p109 = scmp.ne.s32.totalorder %s92, %s108
      %p110 = scmp.eq.s32.totalorder %s18, 0
      %p111 = por %p109, %p110
      %s112 = ssub.s32 %s19, %s31
      %s113 = ssub.s32 %s20, %s27
      %s114 = sor.u32 %s112, %s113
      %p115 = scmp.eq.s32.totalorder %s114, 0
      %s117 = sadd.s32 %s116, 1
      %s118 = scalar_select %p115, %s116, %s117
      %p121 = pneg %p115
      %p122 = scmp.eq.s32.totalorder %s12, 1
      %p123 = por %p121, %p122
      %p124 = scmp.ne.s32.totalorder %s116, %s119
      %p125 = scmp.eq.s32.totalorder %s12, 0
      %p126 = por %p124, %p125
      %p127 = scmp.ne.s32.totalorder %s116, %s119
      %p128 = scmp.eq.s32.totalorder %s17, 1
      %p129 = por %p127, %p128
      %p130 = scmp.ne.s32.totalorder %s119, %s120
      %p131 = scmp.eq.s32.totalorder %s17, 0
      %p132 = por %p130, %p131
      %p133 = scmp.ne.s32.totalorder %s119, %s120
      %p134 = scmp.eq.s32.totalorder %s18, 1
      %p135 = por %p133, %p134
      %p137 = scmp.ne.s32.totalorder %s120, %s136
      %p138 = scmp.eq.s32.totalorder %s18, 0
      %p139 = por %p137, %p138
      %p140 = scmp.le.s32.totalorder 1, %s12
      %p141 = scmp.lt.s32.totalorder %s12, 3
      %p142 = pnand %p140, %p141
      %p143 = pneg %p142
      // Predicated region
      $region9: #{tpu_custom_call.1} parent=5 // pred_check
        _
      $region10: #{tpu_custom_call.1} parent=5 // pred_check_branch
        %145 = sbr.rel (%p142) target = $region12
      $region11: #{tpu_custom_call.1} parent=5 // pred_region
        %s146 = ssub.s32 %s12, 1
      $region12: #{tpu_custom_call.1} parent=5 // pred_fallthru
        _
      %p147 = scmp.lt.s32.totalorder %s12, 2
      // Predicated region
      $region13: #{tpu_custom_call.1} parent=5 // pred_check
        %p148 = pneg %p147
      $region14: #{tpu_custom_call.1} parent=5 // pred_check_branch
        %150 = sbr.rel (%p148) target = $region16
      $region15: #{tpu_custom_call.1} parent=5 // pred_region
        // Predicated region
        $region17: #{tpu_custom_call.1} parent=15 // pred_check
          %p151 = pneg %p46
        $region18: #{tpu_custom_call.1} parent=15 // pred_check_branch
          %153 = sbr.rel (%p151) target = $region20
        $region19: #{tpu_custom_call.1} parent=15 // pred_region
          %s154 = smul.u32 8, %s20
          %p155 = scmp.lt.s32.totalorder %s19, 1
          %s156 = scalar_select %p155, %s19, 1
          %p157 = scmp.lt.s32.totalorder %s154, 7
          %s158 = scalar_select %p157, %s154, 7
          %s159 = smul.addr %s156, 8
          %s160 = sadd.s32 %s158, %s159
          %s161 = smul.addr %s160, 8
          %s162 = scalar_lea.vmem %s0, %s161
          %s163 = smul.u32 8, %s20
        $region20: #{tpu_custom_call.1} parent=15 // pred_fallthru
          _
        // Predicated region
        $region21: #{tpu_custom_call.1} parent=15 // pred_check
          %p164 = pneg %p72
        $region22: #{tpu_custom_call.1} parent=15 // pred_check_branch
          %166 = sbr.rel (%p164) target = $region24
        $region23: #{tpu_custom_call.1} parent=15 // pred_region
          %p167 = scmp.lt.s32.totalorder %s19, 1
          %s168 = scalar_select %p167, %s19, 1
          %s169 = smul.addr %s168, 8
          %s170 = smul.addr %s169, 8
          %s171 = scalar_lea.vmem %s1, %s170
        $region24: #{tpu_custom_call.1} parent=15 // pred_fallthru
          _
        // Predicated region
        $region25: #{tpu_custom_call.1} parent=15 // pred_check
          %p172 = pneg %p98
        $region26: #{tpu_custom_call.1} parent=15 // pred_check_branch
          %174 = sbr.rel (%p172) target = $region28
        $region27: #{tpu_custom_call.1} parent=15 // pred_region
          %p175 = scmp.lt.s32.totalorder %s19, 1
          %s176 = scalar_select %p175, %s19, 1
          %s177 = scalar_lea.vmem %s2, %s176
        $region28: #{tpu_custom_call.1} parent=15 // pred_fallthru
          _
      $region16: #{tpu_custom_call.1} parent=5 // pred_fallthru
        _
      %p178 = scmp.le.s32.totalorder 1, %s12
      %p179 = scmp.lt.s32.totalorder %s12, 3
      %p180 = pnand %p178, %p179
      %p181 = pneg %p180
      // Predicated region
      $region29: #{tpu_custom_call.1} parent=5 // pred_check
        _
      $region30: #{tpu_custom_call.1} parent=5 // pred_check_branch
        %183 = sbr.rel (%p180) target = $region32
      $region31: #{tpu_custom_call.1} parent=5 // pred_region
        %s184 = ssub.s32 %s12, 1
        %s185 = smul.u32 8, %s22
        %p186 = scmp.lt.s32.totalorder %s21, 1
        %s187 = scalar_select %p186, %s21, 1
        %p188 = scmp.lt.s32.totalorder %s185, 7
        %s189 = scalar_select %p188, %s185, 7
        %s190 = smul.addr %s187, 8
        %s191 = sadd.s32 %s189, %s190
        %s192 = smul.addr %s191, 8
        %s193 = scalar_lea.vmem %s0, %s192
        %p194 = pneg %p52
        %p195 = pneg %p49
        %p196 = scmp.lt.s32.totalorder %s21, 1
        %s197 = scalar_select %p196, %s21, 1
        %s198 = smul.addr %s197, 8
        %s199 = smul.addr %s198, 8
        %s200 = scalar_lea.vmem %s1, %s199
        %p201 = pneg %p78
        %p202 = pneg %p75
        %p203 = scmp.lt.s32.totalorder %s21, 1
        %s204 = scalar_select %p203, %s21, 1
        %s205 = scalar_lea.vmem %s2, %s204
        %p206 = pneg %p104
        %p207 = pneg %p101
        %p208 = pneg %p132
        %p209 = pneg %p129
        %s210 = sand.u32 %s119, 1
        %s211 = scalar_lea.sflag [#allocation3], %s210
        %s212 = sand.u32 %s119, 1
        %s213 = smul.addr %s212, 64
        %s214 = scalar_lea.vmem [#allocation2], %s213
        %s215 = smul.u32 8, %s22
        %p216 = scmp.lt.s32.totalorder %s21, 1
        %s217 = scalar_select %p216, %s21, 1
        %p218 = scmp.lt.s32.totalorder %s215, 7
        %s219 = scalar_select %p218, %s215, 7
        %s220 = smul.addr %s217, 8
        %s221 = sadd.s32 %s219, %s220
        %s222 = smul.addr %s221, 8
        %s223 = scalar_lea.vmem %s0, %s222
        %s224 = smul.u32 8, %s22
        %p225 = scmp.lt.s32.totalorder %s21, 1
        %s226 = scalar_select %p225, %s21, 1
        %s227 = smul.addr %s226, 8
        %s228 = smul.addr %s227, 8
        %s229 = scalar_lea.vmem %s1, %s228
        %p230 = scmp.lt.s32.totalorder %s21, 1
        %s231 = scalar_select %p230, %s21, 1
        %s232 = scalar_lea.vmem %s2, %s231
        %s233 = smul.u32 8, %s22
        %v234 = vld [vmem:[%s223] sm:$0xff]
        %v235 = vld [vmem:[%s223 + $0x8] sm:$0xff]
        %v236 = vld [vmem:[%s223 + $0x10] sm:$0xff]
        %v237 = vld [vmem:[%s223 + $0x18] sm:$0xff]
        %v238 = vld [vmem:[%s223 + $0x20] sm:$0xff]
        %v239 = vld [vmem:[%s223 + $0x28] sm:$0xff]
        %v240 = vld [vmem:[%s223 + $0x30] sm:$0xff]
        %v241 = vld [vmem:[%s223 + $0x38] sm:$0xff]
        %v242 = vld [vmem:[%s229] sm:$0xff]
        %v243 = vld [vmem:[%s229 + $0x8] sm:$0xff]
        %v244 = vld [vmem:[%s229 + $0x10] sm:$0xff]
        %v245 = vld [vmem:[%s229 + $0x18] sm:$0xff]
        %v246 = vld [vmem:[%s229 + $0x20] sm:$0xff]
        %v247 = vld [vmem:[%s229 + $0x28] sm:$0xff]
        %v248 = vld [vmem:[%s229 + $0x30] sm:$0xff]
        %v249 = vld [vmem:[%s229 + $0x38] sm:$0xff]
        %vm250 = vcmask 23552
        %v252 = vsel %vm250, %v234, 0
        %v255 = vsel %vm250, %v235, 0
        %v258 = vsel %vm250, %v236, 0
        %v261 = vsel %vm250, %v237, 0
        %v264 = vsel %vm250, %v238, 0
        %v267 = vsel %vm250, %v239, 0
        %v270 = vsel %vm250, %v240, 0
        %v273 = vsel %vm250, %v241, 0
        %v276 = vsel %vm250, %v242, 0
        %v279 = vsel %vm250, %v243, 0
        %v282 = vsel %vm250, %v244, 0
        %v285 = vsel %vm250, %v245, 0
        %v288 = vsel %vm250, %v246, 0
        %v291 = vsel %vm250, %v247, 0
        %v294 = vsel %vm250, %v248, 0
        %v297 = vsel %vm250, %v249, 0
        %299 = vmatpush.xpose.msra.mxu0 0.0
        %300 = vmatpush.xpose.msra.mxu0 0.0
        %301 = vmatpush.xpose.msra.mxu0 0.0
        %302 = vmatpush.xpose.msra.mxu0 0.0
        %303 = vmatpush.xpose.msra.mxu0 0.0
        %304 = vmatpush.xpose.msra.mxu0 0.0
        %305 = vmatpush.xpose.msra.mxu0 0.0
        %306 = vmatpush.xpose.msra.mxu0 0.0
        %307 = vmatpush.xpose.msra.mxu0 %v297
        %308 = vmatpush.xpose.msra.mxu0 %v294
        %309 = vmatpush.xpose.msra.mxu0 %v291
        %310 = vmatpush.xpose.msra.mxu0 %v288
        %311 = vmatpush.xpose.msra.mxu0 %v285
        %312 = vmatpush.xpose.msra.mxu0 %v282
        %313 = vmatpush.xpose.msra.mxu0 %v279
        %314 = vmatpush.xpose.msra.mxu0 %v276
        %315 = vmatmul.f32.gmra.mxu0 %v252
        %v316 = vpop.f32.mrf.mxu0
        %v317 = vadd.f32 0.0, %v316
        %318 = vmatmul.f32.gmra.mxu0 %v255
        %v319 = vpop.f32.mrf.mxu0
        %v320 = vadd.f32 0.0, %v319
        %321 = vmatmul.f32.gmra.mxu0 %v258
        %v322 = vpop.f32.mrf.mxu0
        %v323 = vadd.f32 0.0, %v322
        %324 = vmatmul.f32.gmra.mxu0 %v261
        %v325 = vpop.f32.mrf.mxu0
        %v326 = vadd.f32 0.0, %v325
        %327 = vmatmul.f32.gmra.mxu0 %v264
        %v328 = vpop.f32.mrf.mxu0
        %v329 = vadd.f32 0.0, %v328
        %330 = vmatmul.f32.gmra.mxu0 %v267
        %v331 = vpop.f32.mrf.mxu0
        %v332 = vadd.f32 0.0, %v331
        %333 = vmatmul.f32.gmra.mxu0 %v270
        %v334 = vpop.f32.mrf.mxu0
        %v335 = vadd.f32 0.0, %v334
        %336 = vmatmul.f32.gmra.mxu0 %v273
        %v337 = vpop.f32.mrf.mxu0
        %v338 = vadd.f32 0.0, %v337
        %339 = vdwg.mxu0
        %v340 = vmul.f32 %v234, %v234
        %v341 = vmul.f32 %v235, %v235
        %v342 = vmul.f32 %v236, %v236
        %v343 = vmul.f32 %v237, %v237
        %v344 = vmul.f32 %v238, %v238
        %v345 = vmul.f32 %v239, %v239
        %v346 = vmul.f32 %v240, %v240
        %v347 = vmul.f32 %v241, %v241
        %v348 = vsel %vm250, %v340, 0.0
        %349 = vadd.xlane.f32.xlu0 %v348
        %v350 = vpop.xlane.xlu0 %349
        %v351 = vsel %vm250, %v341, 0.0
        %352 = vadd.xlane.f32.xlu0 %v351
        %v353 = vpop.xlane.xlu0 %352
        %v354 = vsel %vm250, %v342, 0.0
        %355 = vadd.xlane.f32.xlu0 %v354
        %v356 = vpop.xlane.xlu0 %355
        %v357 = vsel %vm250, %v343, 0.0
        %358 = vadd.xlane.f32.xlu0 %v357
        %v359 = vpop.xlane.xlu0 %358
        %v360 = vsel %vm250, %v344, 0.0
        %361 = vadd.xlane.f32.xlu0 %v360
        %v362 = vpop.xlane.xlu0 %361
        %v363 = vsel %vm250, %v345, 0.0
        %364 = vadd.xlane.f32.xlu0 %v363
        %v365 = vpop.xlane.xlu0 %364
        %v366 = vsel %vm250, %v346, 0.0
        %367 = vadd.xlane.f32.xlu0 %v366
        %v368 = vpop.xlane.xlu0 %367
        %v369 = vsel %vm250, %v347, 0.0
        %370 = vadd.xlane.f32.xlu0 %v369
        %v371 = vpop.xlane.xlu0 %370
        %v372 = vmul.f32 %v317, -2.0
        %v373 = vmul.f32 %v320, -2.0
        %v374 = vmul.f32 %v323, -2.0
        %v375 = vmul.f32 %v326, -2.0
        %v376 = vmul.f32 %v329, -2.0
        %v377 = vmul.f32 %v332, -2.0
        %v378 = vmul.f32 %v335, -2.0
        %v379 = vmul.f32 %v338, -2.0
        %v380 = vadd.f32 %v372, %v350
        %v381 = vadd.f32 %v373, %v353
        %v382 = vadd.f32 %v374, %v356
        %v383 = vadd.f32 %v375, %v359
        %v384 = vadd.f32 %v376, %v362
        %v385 = vadd.f32 %v377, %v365
        %v386 = vadd.f32 %v378, %v368
        %v387 = vadd.f32 %v379, %v371
        %v388 = vld [vmem:[%s232] sm:$0x1]
        %v390 = vperm.slane %v388, 0
        %v392 = vadd.f32 %v380, %v390
        %v393 = vadd.f32 %v381, %v390
        %v394 = vadd.f32 %v382, %v390
        %v395 = vadd.f32 %v383, %v390
        %v396 = vadd.f32 %v384, %v390
        %v397 = vadd.f32 %v385, %v390
        %v398 = vadd.f32 %v386, %v390
        %v399 = vadd.f32 %v387, %v390
        %vm400 = vcmask 523264
        %401 = vst.msk [vmem:[%s214] sm:$0xff] %vm400, %v392
        %402 = vst.msk [vmem:[%s214 + $0x8] sm:$0xff] %vm400, %v393
        %403 = vst.msk [vmem:[%s214 + $0x10] sm:$0xff] %vm400, %v394
        %404 = vst.msk [vmem:[%s214 + $0x18] sm:$0xff] %vm400, %v395
        %405 = vst.msk [vmem:[%s214 + $0x20] sm:$0xff] %vm400, %v396
        %406 = vst.msk [vmem:[%s214 + $0x28] sm:$0xff] %vm400, %v397
        %407 = vst.msk [vmem:[%s214 + $0x30] sm:$0xff] %vm400, %v398
        %408 = vst.msk [vmem:[%s214 + $0x38] sm:$0xff] %vm400, %v399
        %s409 = sand.u32 %s119, 1
        %s410 = scalar_lea.sflag [#allocation3], %s409
        %s411 = sand.u32 %s119, 1
        %s412 = smul.addr %s411, 64
        %s413 = scalar_lea.vmem [#allocation2], %s412
        // Predicated region
        $region33: #{tpu_custom_call.1} parent=31 // pred_check
          %p414 = pneg %p129
        $region34: #{tpu_custom_call.1} parent=31 // pred_check_branch
          %416 = sbr.rel (%p414) target = $region36
        $region35: #{tpu_custom_call.1} parent=31 // pred_region
          %s417 = smul.u32 8, %s22
          %419 = vsyncadd %s410, 0
          %s420 = smul.addr %s21, 8
          %s421 = sadd.s32 %s417, %s420
          %s422 = smul.addr %s421, 8
          %s423 = scalar_lea.hbm %s3, %s422
          %s424 = sshll.u32 %s413, 4
          %s425 = int_to_ptr.vmem [resolvable:$true] %s424
          %s426 = sshll.u32 %s423, 4
          %s427 = int_to_ptr.hbm [resolvable:$true] %s426
          %432 = dma.vmem_to_hbm [thread:$0]  %s425, 1024, %s427, %s410, 128, 128, 8
        $region36: #{tpu_custom_call.1} parent=31 // pred_fallthru
          _
      $region32: #{tpu_custom_call.1} parent=5 // pred_fallthru
        _
      %p433 = scmp.le.s32.totalorder 2, %s12
      // Predicated region
      $region37: #{tpu_custom_call.1} parent=5 // pred_check
        %p434 = pneg %p433
      $region38: #{tpu_custom_call.1} parent=5 // pred_check_branch
        %436 = sbr.rel (%p434) target = $region40
      $region39: #{tpu_custom_call.1} parent=5 // pred_region
        %s437 = ssub.s32 %s12, 2
        // Predicated region
        $region41: #{tpu_custom_call.1} parent=39 // pred_check
          %p438 = pneg %p135
        $region42: #{tpu_custom_call.1} parent=39 // pred_check_branch
          %440 = sbr.rel (%p438) target = $region44
        $region43: #{tpu_custom_call.1} parent=39 // pred_region
          %s441 = sand.u32 %s120, 1
          %s442 = scalar_lea.sflag [#allocation3], %s441
          %s443 = sand.u32 %s120, 1
          %s444 = smul.addr %s443, 64
          %s445 = scalar_lea.vmem [#allocation2], %s444
          %447 = dma.done %s442, 1024
        $region44: #{tpu_custom_call.1} parent=39 // pred_fallthru
          _
      $region40: #{tpu_custom_call.1} parent=5 // pred_fallthru
        _
    $region6: #{tpu_custom_call.1} parent=1 // loop_footer
      %s16 = sadd.s32 1, %s12
    $region7: #{tpu_custom_call.1} parent=1 // loop_footer_branch
      %11 = sbr.rel target = $region3
    $region8: #{tpu_custom_call.1} parent=1 // loop_exit
      _
    %448 = vsyncpa [#allocation3], 1
    %s449 = scalar_lea.sflag [#allocation3], 1
    %450 = vsyncpa %s449, 1

</llo_original>
